<compile_context>
chip_gen: v5e
topology: v5e:2x2
jax: 0.10.0
libtpu: 0.0.40
codegen_flags: <defaults>
</compile_context>

<pallas_src>
import functools

import jax
import jax.numpy as jnp
from jax import lax
from jax.experimental import pallas as pl
from jax.experimental.pallas import tpu as pltpu

_MIB = 1024 * 1024


# ----------------------------------------------------------------------------
# Generation-aware VMEM budgets
# ----------------------------------------------------------------------------
def _vmem_capacity_bytes():
    try:
        info = pltpu.get_tpu_info()
        cap = getattr(info, "vmem_capacity_bytes", None)
        if cap:
            return int(cap)
    except Exception:
        pass
    return 64 * _MIB  # conservative fallback (v7x per-TC VMEM)


def _budgets():
    cap = _vmem_capacity_bytes()
    # v5e/v6e (128 MiB): limit 96 MiB, ~42 MiB of live tile buffers.
    # v7x (64 MiB):      limit 48 MiB, ~21 MiB of live tile buffers.
    vmem_limit = int(min(cap * 3 // 4, 96 * _MIB))
    tile_budget = int(min(cap // 3, 44 * _MIB))
    return vmem_limit, tile_budget


def _pick_time_tile(t_len, bytes_per_col, budget_bytes):
    """Largest lane-dense (multiple-of-128) time tile fitting the VMEM budget.

    No divisibility requirement: the grid uses pl.cdiv and the last (partial)
    tile is masked.
    """
    if t_len <= 128:
        return t_len  # block dim == full array dim (always legal)
    tt = (budget_bytes // max(bytes_per_col, 1)) // 128 * 128
    tt = max(tt, 128)
    return min(tt, (t_len // 128) * 128)


# ----------------------------------------------------------------------------
# Kernels
# ----------------------------------------------------------------------------
def _gln_fused_kernel(x_ref, gamma_ref, beta_ref, o_ref, *, eps, inv_count):
    # x_ref/o_ref: (1, C, T) resident slab; gamma_ref/beta_ref: (C, 1).
    x = x_ref[...].astype(jnp.float32)
    mean = jnp.sum(x, keepdims=True) * inv_count            # (1, 1, 1)
    d = x - mean
    var = jnp.sum(d * d, keepdims=True) * inv_count          # (1, 1, 1)
    inv_std = lax.rsqrt(var + eps)
    scale = gamma_ref[...].astype(jnp.float32)[None] * inv_std   # (1, C, 1)
    shift = beta_ref[...].astype(jnp.float32)[None]              # (1, C, 1)
    o_ref[...] = (d * scale + shift).astype(o_ref.dtype)


def _gln_stats_kernel(x_ref, sum_ref, sq_ref, *, t_tile, t_len, needs_mask):
    # x_ref: (1, C, t_tile) tile; sum_ref/sq_ref: (1, 1, 1) resident accumulators.
    t = pl.program_id(1)

    @pl.when(t == 0)
    def _init():
        sum_ref[...] = jnp.zeros_like(sum_ref)
        sq_ref[...] = jnp.zeros_like(sq_ref)

    x = x_ref[...].astype(jnp.float32)
    if needs_mask:
        # Zero the out-of-range columns of the final, partial tile (the mask is
        # a no-op on all other tiles).
        col = t * t_tile + lax.broadcasted_iota(jnp.int32, x.shape, 2)
        x = jnp.where(col < t_len, x, 0.0)
    # Single traversal: sum and sum-of-squares together (var = E[x^2] - mean^2).
    sum_ref[...] += jnp.sum(x, keepdims=True)
    sq_ref[...] += jnp.sum(x * x, keepdims=True)


def _gln_norm_kernel(x_ref, scale_ref, shift_ref, o_ref):
    # x_ref/o_ref: (1, C, t_tile); scale_ref/shift_ref: (1, C, 1) per-channel.
    x = x_ref[...].astype(jnp.float32)
    o_ref[...] = (x * scale_ref[...] + shift_ref[...]).astype(o_ref.dtype)


# ----------------------------------------------------------------------------
# Wrapper
# ----------------------------------------------------------------------------
def global_channel_layer_norm(x, gamma, beta, eps=1e-5, force_two_pass=False):
    """x: (N, C, T); gamma, beta: (C, 1). Returns (N, C, T), same dtype as x."""
    if x.ndim != 3:
        raise RuntimeError("GlobalChannelLayerNorm accepts 3D tensor as input")
    N, C, T = x.shape
    assert gamma.shape == (C, 1) and beta.shape == (C, 1)

    itemsize = jnp.dtype(x.dtype).itemsize
    vmem_limit, tile_budget = _budgets()

    slab_io = C * T * itemsize
    slab_f32 = C * T * 4

    # ---------------- fused single-pass path (slab fits VMEM) ----------------
    # Budget: in + out double-buffered slabs plus ~3 f32-slab temporaries.
    if (not force_two_pass) and (4 * slab_io + 3 * slab_f32 <= vmem_limit):
        kernel = functools.partial(
            _gln_fused_kernel, eps=float(eps), inv_count=1.0 / float(C * T))
        return pl.pallas_call(
            kernel,
            out_shape=jax.ShapeDtypeStruct((N, C, T), x.dtype),
            grid_spec=pltpu.PrefetchScalarGridSpec(
                num_scalar_prefetch=0,
                grid=(N,),
                in_specs=[
                    pl.BlockSpec((1, C, T), lambda n: (n, 0, 0)),
                    pl.BlockSpec((C, 1), lambda n: (0, 0)),
                    pl.BlockSpec((C, 1), lambda n: (0, 0)),
                ],
                out_specs=pl.BlockSpec((1, C, T), lambda n: (n, 0, 0)),
            ),
            compiler_params=pltpu.CompilerParams(
                dimension_semantics=("parallel",),
                vmem_limit_bytes=vmem_limit,
            ),
        )(x, gamma, beta)

    # ---------------- two-pass T-tiled path (large C*T) ----------------------
    # pass 1: per-batch sum & sum-of-squares (only the input is pipelined, so
    # it gets a ~2x bigger tile than pass 2 from the same budget).
    t_tile1 = _pick_time_tile(T, 2 * C * itemsize, tile_budget)
    n_t1 = pl.cdiv(T, t_tile1)
    stats_kernel = functools.partial(
        _gln_stats_kernel, t_tile=t_tile1, t_len=T,
        needs_mask=(T % t_tile1) != 0)

    sums, sqs = pl.pallas_call(
        stats_kernel,
        out_shape=(
            jax.ShapeDtypeStruct((N, 1, 1), jnp.float32),
            jax.ShapeDtypeStruct((N, 1, 1), jnp.float32),
        ),
        grid_spec=pltpu.PrefetchScalarGridSpec(
            num_scalar_prefetch=0,
            grid=(N, n_t1),
            in_specs=[pl.BlockSpec((1, C, t_tile1), lambda n, t: (n, 0, t))],
            out_specs=(
                pl.BlockSpec((1, 1, 1), lambda n, t: (n, 0, 0)),
                pl.BlockSpec((1, 1, 1), lambda n, t: (n, 0, 0)),
            ),
        ),
        compiler_params=pltpu.CompilerParams(
            dimension_semantics=("parallel", "arbitrary"),
            vmem_limit_bytes=vmem_limit,
        ),
    )(x)

    # Tiny (N, C)-sized fold of stats + affine params into per-channel scale/shift.
    # Divide by T then C (each exactly representable) rather than by C*T.
    mean = (sums[:, 0, 0] / jnp.float32(T)) / jnp.float32(C)       # (N,)
    ex2 = (sqs[:, 0, 0] / jnp.float32(T)) / jnp.float32(C)         # (N,)
    var = jnp.maximum(ex2 - mean * mean, 0.0)                      # guard cancellation
    inv_std = lax.rsqrt(var + jnp.float32(eps))                    # (N,)

    g = gamma[:, 0].astype(jnp.float32)                            # (C,)
    b = beta[:, 0].astype(jnp.float32)                             # (C,)
    scale2 = g[None, :] * inv_std[:, None]                         # (N, C)
    shift2 = b[None, :] - mean[:, None] * scale2                   # (N, C)
    scale = scale2[:, :, None]                                     # (N, C, 1)
    shift = shift2[:, :, None]                                     # (N, C, 1)

    # pass 2: y = x * scale + shift (one read + one write of x).
    t_tile2 = _pick_time_tile(T, 4 * C * itemsize, tile_budget)
    n_t2 = pl.cdiv(T, t_tile2)

    return pl.pallas_call(
        _gln_norm_kernel,
        out_shape=jax.ShapeDtypeStruct((N, C, T), x.dtype),
        grid_spec=pltpu.PrefetchScalarGridSpec(
            num_scalar_prefetch=0,
            grid=(N, n_t2),
            in_specs=[
                pl.BlockSpec((1, C, t_tile2), lambda n, t: (n, 0, t)),
                pl.BlockSpec((1, C, 1), lambda n, t: (n, 0, 0)),
                pl.BlockSpec((1, C, 1), lambda n, t: (n, 0, 0)),
            ],
            out_specs=pl.BlockSpec((1, C, t_tile2), lambda n, t: (n, 0, t)),
        ),
        compiler_params=pltpu.CompilerParams(
            dimension_semantics=("parallel", "parallel"),
            vmem_limit_bytes=vmem_limit,
        ),
    )(x, scale, shift)


def reference_gln(x, gamma, beta, eps=1e-5):
    xf = x.astype(jnp.float32)
    mean = jnp.mean(xf, axis=(1, 2), keepdims=True)
    var = jnp.mean((xf - mean) ** 2, axis=(1, 2), keepdims=True)
    y = gamma[None] * (xf - mean) / jnp.sqrt(var + eps) + beta[None]
    return y.astype(x.dtype)


if __name__ == "__main__":
    key = jax.random.PRNGKey(0)

    # Deterministic parameter init matching nn.Module.__init__:
    # beta = zeros(dim, 1), gamma = ones(dim, 1)
    # --- case 1: small shape, exercises the fused single-pass path ---
    N, C, T = 2, 4, 16
    x = jax.random.normal(key, (N, C, T), dtype=jnp.float32)
    gamma = jnp.ones((C, 1), dtype=jnp.float32)
    beta = jnp.zeros((C, 1), dtype=jnp.float32)

    out = global_channel_layer_norm(x, gamma, beta, eps=1e-5)
    out = jax.block_until_ready(out)
    ref = reference_gln(x, gamma, beta, eps=1e-5)
    assert out.shape == (N, C, T)
    assert jnp.allclose(out, ref, atol=2e-5, rtol=2e-5), "fused path mismatch"

    # --- case 2: two-pass path with a non-dividing T (exercises masking) ---
    N2, C2, T2 = 2, 4, 300
    x2 = jax.random.normal(jax.random.PRNGKey(1), (N2, C2, T2), dtype=jnp.float32)
    gamma2 = jnp.ones((C2, 1), dtype=jnp.float32)
    beta2 = jnp.zeros((C2, 1), dtype=jnp.float32)

    out2 = global_channel_layer_norm(x2, gamma2, beta2, eps=1e-5,
                                     force_two_pass=True)
    out2 = jax.block_until_ready(out2)
    ref2 = reference_gln(x2, gamma2, beta2, eps=1e-5)
    assert out2.shape == (N2, C2, T2)
    assert jnp.allclose(out2, ref2, atol=1e-4, rtol=1e-4), "two-pass mismatch"

    print("KERNEL_OK")
</pallas_src>

<mosaic_0001>
module attributes {stable_mosaic.version = 11 : i64} {
  func.func @_gln_fused_kernel(%arg0: i32, %arg1: memref<1x4x16xf32, #tpu.memory_space<vmem>>, %arg2: memref<4x1xf32, #tpu.memory_space<vmem>>, %arg3: memref<4x1xf32, #tpu.memory_space<vmem>>, %arg4: memref<1x4x16xf32, #tpu.memory_space<vmem>>) attributes {dimension_semantics = [#tpu.dimension_semantics<parallel>], iteration_bounds = array<i64: 2>, scalar_prefetch = 0 : i64, scratch_operands = 0 : i64, tpu.core_type = #tpu.core_type<tc>, window_params = [{transform_indices = @transform_0, window_bounds = array<i64: 1, 4, 16>}, {pipeline_mode = #tpu.pipeline_mode<synchronous>, transform_indices = @transform_1, window_bounds = array<i64: 4, 1>}, {pipeline_mode = #tpu.pipeline_mode<synchronous>, transform_indices = @transform_2, window_bounds = array<i64: 4, 1>}, {transform_indices = @transform_3, window_bounds = array<i64: 1, 4, 16>}]} {
    %c0 = arith.constant 0 : index
    %c0_0 = arith.constant 0 : index
    %c0_1 = arith.constant 0 : index
    %0 = vector.load %arg1[%c0, %c0_0, %c0_1] : memref<1x4x16xf32, #tpu.memory_space<vmem>>, vector<1x4x16xf32>
    %1 = vector.shape_cast %0 : vector<1x4x16xf32> to vector<1x1x4x16xf32>
    %cst = arith.constant dense<0.000000e+00> : vector<1xf32>
    %2 = vector.multi_reduction <add>, %1, %cst [1, 2, 3] : vector<1x1x4x16xf32> to vector<1xf32>
    %3 = vector.shape_cast %2 : vector<1xf32> to vector<1x1x1x1xf32>
    %4 = vector.extract %3[0, 0, 0, 0] : f32 from vector<1x1x1x1xf32>
    %5 = vector.broadcast %4 : f32 to vector<1x1x1xf32>
    %cst_2 = arith.constant 1.562500e-02 : f32
    %6 = vector.broadcast %cst_2 : f32 to vector<1x1x1xf32>
    %7 = arith.mulf %5, %6 : vector<1x1x1xf32>
    %8 = vector.broadcast %7 : vector<1x1x1xf32> to vector<1x4x16xf32>
    %9 = arith.subf %0, %8 : vector<1x4x16xf32>
    %10 = arith.mulf %9, %9 : vector<1x4x16xf32>
    %11 = vector.shape_cast %10 : vector<1x4x16xf32> to vector<1x1x4x16xf32>
    %cst_3 = arith.constant dense<0.000000e+00> : vector<1xf32>
    %12 = vector.multi_reduction <add>, %11, %cst_3 [1, 2, 3] : vector<1x1x4x16xf32> to vector<1xf32>
    %13 = vector.shape_cast %12 : vector<1xf32> to vector<1x1x1x1xf32>
    %14 = vector.extract %13[0, 0, 0, 0] : f32 from vector<1x1x1x1xf32>
    %15 = vector.broadcast %14 : f32 to vector<1x1x1xf32>
    %cst_4 = arith.constant 1.562500e-02 : f32
    %16 = vector.broadcast %cst_4 : f32 to vector<1x1x1xf32>
    %17 = arith.mulf %15, %16 : vector<1x1x1xf32>
    %cst_5 = arith.constant 9.99999974E-6 : f32
    %18 = vector.broadcast %cst_5 : f32 to vector<1x1x1xf32>
    %19 = arith.addf %17, %18 : vector<1x1x1xf32>
    %20 = math.rsqrt %19 : vector<1x1x1xf32>
    %c0_6 = arith.constant 0 : index
    %c0_7 = arith.constant 0 : index
    %21 = vector.load %arg2[%c0_6, %c0_7] : memref<4x1xf32, #tpu.memory_space<vmem>>, vector<4x1xf32>
    %22 = vector.shape_cast %21 : vector<4x1xf32> to vector<1x4x1xf32>
    %23 = vector.broadcast %20 : vector<1x1x1xf32> to vector<1x4x1xf32>
    %24 = arith.mulf %22, %23 : vector<1x4x1xf32>
    %c0_8 = arith.constant 0 : index
    %c0_9 = arith.constant 0 : index
    %25 = vector.load %arg3[%c0_8, %c0_9] : memref<4x1xf32, #tpu.memory_space<vmem>>, vector<4x1xf32>
    %26 = vector.shape_cast %25 : vector<4x1xf32> to vector<1x4x1xf32>
    %27 = vector.broadcast %24 : vector<1x4x1xf32> to vector<1x4x16xf32>
    %28 = arith.mulf %9, %27 : vector<1x4x16xf32>
    %29 = vector.broadcast %26 : vector<1x4x1xf32> to vector<1x4x16xf32>
    %30 = arith.addf %28, %29 : vector<1x4x16xf32>
    %c0_10 = arith.constant 0 : index
    %c0_11 = arith.constant 0 : index
    %c0_12 = arith.constant 0 : index
    %31 = vector.load %arg4[%c0_10, %c0_11, %c0_12] : memref<1x4x16xf32, #tpu.memory_space<vmem>>, vector<1x4x16xf32>
    tpu.vector_store %arg4[%c0_10, %c0_11, %c0_12], %30 {strides = array<i32>} : memref<1x4x16xf32, #tpu.memory_space<vmem>>, vector<1x4x16xf32>,
    return
  }
  func.func @transform_0(%arg0: i32) -> (i32, i32, i32) {
    %c0_i32 = arith.constant 0 : i32
    %c0_i32_0 = arith.constant 0 : i32
    %c0_i32_1 = arith.constant 0 : i32
    return %arg0, %c0_i32, %c0_i32_0 : i32, i32, i32
  }
  func.func @transform_1(%arg0: i32) -> (i32, i32) {
    %c0_i32 = arith.constant 0 : i32
    %c0_i32_0 = arith.constant 0 : i32
    %c0_i32_1 = arith.constant 0 : i32
    return %c0_i32, %c0_i32_0 : i32, i32
  }
  func.func @transform_2(%arg0: i32) -> (i32, i32) {
    %c0_i32 = arith.constant 0 : i32
    %c0_i32_0 = arith.constant 0 : i32
    %c0_i32_1 = arith.constant 0 : i32
    return %c0_i32, %c0_i32_0 : i32, i32
  }
  func.func @transform_3(%arg0: i32) -> (i32, i32, i32) {
    %c0_i32 = arith.constant 0 : i32
    %c0_i32_0 = arith.constant 0 : i32
    %c0_i32_1 = arith.constant 0 : i32
    return %arg0, %c0_i32, %c0_i32_0 : i32, i32, i32
  }
}

</mosaic_0001>

<llo_original>
// kernel: tpu_custom_call.1
$region0: #{tpu_custom_call.1}
  #allocation0 [shape = 'u32[]', space=smem, size = 0x4, offset = 0x4, fixed_abs, tag = 'smem constant byte address 0x4 - core index']
  #allocation1 [shape = 'u32[72,128]{1,0:T(1,128)}', space=vmem, size = 0x9000, scoped, tag = 'internal scratch']
  %s0 = inlined_call_operand.vmem [shape: f32[2,4,16], index: 0, kind: input, shape index: {}]
  %s1 = inlined_call_operand.vmem [shape: f32[4,1], index: 1, kind: input, shape index: {}]
  %s2 = inlined_call_operand.vmem [shape: f32[4,1], index: 2, kind: input, shape index: {}]
  %s3 = inlined_call_operand.hbm [shape: f32[2,4,16], index: 3, kind: output, shape index: {}]
  %s4 = sld [smem:[#allocation0]]
  $region45: #{tpu_custom_call.1} parent=0
    _
  %s6 = ssub.s32 1, %s4
  %s7 = scalar_select 0, %s6, %s4
  $region1: #{tpu_custom_call.1} parent=0
    #allocation2 [shape = 'u8[4096]{0}', space=vmem, size = 0x1000, scoped, tag = 'output window, operand 0']
    #allocation3 [shape = 's32[2]{0}', space=sflag, size = 0x8, scoped, tag = 'scoped memory for tpu_custom_call.1']
    %8 = vsyncpa [#allocation3], 0
    %s9 = scalar_lea.sflag [#allocation3], 1
    %10 = vsyncpa %s9, 0
    loop: start=0, step=1, limit=4
    $region2: #{tpu_custom_call.1} parent=1 // loop_pre_header
      _
    $region3: #{tpu_custom_call.1} parent=1 // loop_header
      %s12 = sphi 0, %s16
      %p13 = scmp.ge.s32.totalorder %s12, 4
      %s22 = sphi 0, %s24
      %s25 = sphi 0, %s22
      %s26 = sphi 0, %s25
      %s42 = sphi 0, %s26
      %s46 = sphi 0, %s46
      %s48 = sphi 0, %s46
      %s49 = sphi 0, %s48
      %s63 = sphi 0, %s49
      %s67 = sphi 0, %s67
      %s69 = sphi 0, %s67
      %s70 = sphi 0, %s69
      %s84 = sphi 0, %s70
      %s90 = sphi 0, %s92
      %s93 = sphi 0, %s90
      %s94 = sphi 0, %s93
      %s110 = sphi 0, %s94
    $region4: #{tpu_custom_call.1} parent=1 // loop_header_branch
      %15 = sbr.rel (%p13) target = $region8
    $region5: #{tpu_custom_call.1} parent=1 // loop_body
      %s17 = ssub.s32 %s12, 1
      %s18 = ssub.s32 %s12, 2
      %s19 = sadd.s32 %s12, 1
      %s20 = ssub.s32 %s12, %s19
      %p21 = scmp.eq.s32.totalorder %s20, 0
      %s23 = sadd.s32 %s22, 1
      %s24 = scalar_select %p21, %s22, %s23
      %p27 = pneg %p21
      %p28 = scmp.eq.s32.totalorder %s12, 1
      %p29 = por %p27, %p28
      %p30 = scmp.ne.s32.totalorder %s22, %s25
      %p31 = scmp.eq.s32.totalorder %s12, 0
      %p32 = por %p30, %p31
      %p33 = scmp.ne.s32.totalorder %s22, %s25
      %p34 = scmp.eq.s32.totalorder %s17, 1
      %p35 = por %p33, %p34
      %p36 = scmp.ne.s32.totalorder %s25, %s26
      %p37 = scmp.eq.s32.totalorder %s17, 0
      %p38 = por %p36, %p37
      %p39 = scmp.ne.s32.totalorder %s25, %s26
      %p40 = scmp.eq.s32.totalorder %s18, 1
      %p41 = por %p39, %p40
      %p43 = scmp.ne.s32.totalorder %s26, %s42
      %p44 = scmp.eq.s32.totalorder %s18, 0
      %p45 = por %p43, %p44
      %s47 = sadd.s32 %s46, 1
      %p50 = scmp.eq.s32.totalorder %s12, 1
      %p51 = scmp.ne.s32.totalorder %s46, %s48
      %p52 = scmp.eq.s32.totalorder %s12, 0
      %p53 = por %p51, %p52
      %p54 = scmp.ne.s32.totalorder %s46, %s48
      %p55 = scmp.eq.s32.totalorder %s17, 1
      %p56 = por %p54, %p55
      %p57 = scmp.ne.s32.totalorder %s48, %s49
      %p58 = scmp.eq.s32.totalorder %s17, 0
      %p59 = por %p57, %p58
      %p60 = scmp.ne.s32.totalorder %s48, %s49
      %p61 = scmp.eq.s32.totalorder %s18, 1
      %p62 = por %p60, %p61
      %p64 = scmp.ne.s32.totalorder %s49, %s63
      %p65 = scmp.eq.s32.totalorder %s18, 0
      %p66 = por %p64, %p65
      %s68 = sadd.s32 %s67, 1
      %p71 = scmp.eq.s32.totalorder %s12, 1
      %p72 = scmp.ne.s32.totalorder %s67, %s69
      %p73 = scmp.eq.s32.totalorder %s12, 0
      %p74 = por %p72, %p73
      %p75 = scmp.ne.s32.totalorder %s67, %s69
      %p76 = scmp.eq.s32.totalorder %s17, 1
      %p77 = por %p75, %p76
      %p78 = scmp.ne.s32.totalorder %s69, %s70
      %p79 = scmp.eq.s32.totalorder %s17, 0
      %p80 = por %p78, %p79
      %p81 = scmp.ne.s32.totalorder %s69, %s70
      %p82 = scmp.eq.s32.totalorder %s18, 1
      %p83 = por %p81, %p82
      %p85 = scmp.ne.s32.totalorder %s70, %s84
      %p86 = scmp.eq.s32.totalorder %s18, 0
      %p87 = por %p85, %p86
      %s88 = ssub.s32 %s12, %s19
      %p89 = scmp.eq.s32.totalorder %s88, 0
      %s91 = sadd.s32 %s90, 1
      %s92 = scalar_select %p89, %s90, %s91
      %p95 = pneg %p89
      %p96 = scmp.eq.s32.totalorder %s12, 1
      %p97 = por %p95, %p96
      %p98 = scmp.ne.s32.totalorder %s90, %s93
      %p99 = scmp.eq.s32.totalorder %s12, 0
      %p100 = por %p98, %p99
      %p101 = scmp.ne.s32.totalorder %s90, %s93
      %p102 = scmp.eq.s32.totalorder %s17, 1
      %p103 = por %p101, %p102
      %p104 = scmp.ne.s32.totalorder %s93, %s94
      %p105 = scmp.eq.s32.totalorder %s17, 0
      %p106 = por %p104, %p105
      %p107 = scmp.ne.s32.totalorder %s93, %s94
      %p108 = scmp.eq.s32.totalorder %s18, 1
      %p109 = por %p107, %p108
      %p111 = scmp.ne.s32.totalorder %s94, %s110
      %p112 = scmp.eq.s32.totalorder %s18, 0
      %p113 = por %p111, %p112
      %p114 = scmp.le.s32.totalorder 1, %s12
      %p115 = scmp.lt.s32.totalorder %s12, 3
      %p116 = pnand %p114, %p115
      %p117 = pneg %p116
      // Predicated region
      $region9: #{tpu_custom_call.1} parent=5 // pred_check
        _
      $region10: #{tpu_custom_call.1} parent=5 // pred_check_branch
        %119 = sbr.rel (%p116) target = $region12
      $region11: #{tpu_custom_call.1} parent=5 // pred_region
        %s120 = ssub.s32 %s12, 1
        // Predicated region
        $region13: #{tpu_custom_call.1} parent=11 // pred_check
          %p121 = pneg %p59
        $region14: #{tpu_custom_call.1} parent=11 // pred_check_branch
          %123 = sbr.rel (%p121) target = $region16
        $region15: #{tpu_custom_call.1} parent=11 // pred_region
          _
        $region16: #{tpu_custom_call.1} parent=11 // pred_fallthru
          _
        // Predicated region
        $region17: #{tpu_custom_call.1} parent=11 // pred_check
          %p124 = pneg %p80
        $region18: #{tpu_custom_call.1} parent=11 // pred_check_branch
          %126 = sbr.rel (%p124) target = $region20
        $region19: #{tpu_custom_call.1} parent=11 // pred_region
          _
        $region20: #{tpu_custom_call.1} parent=11 // pred_fallthru
          _
      $region12: #{tpu_custom_call.1} parent=5 // pred_fallthru
        _
      %p127 = scmp.lt.s32.totalorder %s12, 2
      // Predicated region
      $region21: #{tpu_custom_call.1} parent=5 // pred_check
        %p128 = pneg %p127
      $region22: #{tpu_custom_call.1} parent=5 // pred_check_branch
        %130 = sbr.rel (%p128) target = $region24
      $region23: #{tpu_custom_call.1} parent=5 // pred_region
        // Predicated region
        $region25: #{tpu_custom_call.1} parent=23 // pred_check
          %p131 = pneg %p32
        $region26: #{tpu_custom_call.1} parent=23 // pred_check_branch
          %133 = sbr.rel (%p131) target = $region28
        $region27: #{tpu_custom_call.1} parent=23 // pred_region
          %p134 = scmp.lt.s32.totalorder %s12, 1
          %s135 = scalar_select %p134, %s12, 1
          %s136 = smul.addr %s135, 4
          %s137 = scalar_lea.vmem %s0, %s136
        $region28: #{tpu_custom_call.1} parent=23 // pred_fallthru
          _
      $region24: #{tpu_custom_call.1} parent=5 // pred_fallthru
        _
      %p138 = scmp.le.s32.totalorder 1, %s12
      %p139 = scmp.lt.s32.totalorder %s12, 3
      %p140 = pnand %p138, %p139
      %p141 = pneg %p140
      // Predicated region
      $region29: #{tpu_custom_call.1} parent=5 // pred_check
        _
      $region30: #{tpu_custom_call.1} parent=5 // pred_check_branch
        %143 = sbr.rel (%p140) target = $region32
      $region31: #{tpu_custom_call.1} parent=5 // pred_region
        %s144 = ssub.s32 %s12, 1
        %p145 = scmp.lt.s32.totalorder %s17, 1
        %s146 = scalar_select %p145, %s17, 1
        %s147 = smul.addr %s146, 4
        %s148 = scalar_lea.vmem %s0, %s147
        %p149 = pneg %p38
        %p150 = pneg %p35
        %p151 = pneg %p59
        %p152 = pneg %p56
        %p153 = pneg %p80
        %p154 = pneg %p77
        %p155 = pneg %p106
        %p156 = pneg %p103
        %s157 = sand.u32 %s93, 1
        %s158 = scalar_lea.sflag [#allocation3], %s157
        %s159 = sand.u32 %s93, 1
        %s160 = smul.addr %s159, 4
        %s161 = scalar_lea.vmem [#allocation2], %s160
        %p162 = scmp.lt.s32.totalorder %s17, 1
        %s163 = scalar_select %p162, %s17, 1
        %s164 = smul.addr %s163, 4
        %s165 = scalar_lea.vmem %s0, %s164
        %v166 = vld [vmem:[%s165] sm:$0xf]
        %vm167 = vcmask 125952
        %v168 = vsel %vm167, %v166, 0.0
        %169 = vadd.xlane.f32.xlu0 %v168
        %v170 = vpop.xlane.xlu0 %169
        %v171 = vrot.slane %v170, 4
        %v172 = vadd.f32 %v170, %v171
        %v173 = vrot.slane %v172, 2
        %v174 = vadd.f32 %v172, %v173
        %v175 = vrot.slane %v174, 1
        %v176 = vadd.f32 %v174, %v175
        %s177 = vtos %v176
        %v178 = vstv %s177
        %v179 = vmul.f32 %v178, 0.015625
        %v180 = vsub.f32 %v166, %v179
        %v181 = vmul.f32 %v180, %v180
        %v182 = vsel %vm167, %v181, 0.0
        %183 = vadd.xlane.f32.xlu0 %v182
        %v184 = vpop.xlane.xlu0 %183
        %v185 = vrot.slane %v184, 4
        %v186 = vadd.f32 %v184, %v185
        %v187 = vrot.slane %v186, 2
        %v188 = vadd.f32 %v186, %v187
        %v189 = vrot.slane %v188, 1
        %v190 = vadd.f32 %v188, %v189
        %s191 = vtos %v190
        %v192 = vstv %s191
        %v193 = vmul.f32 %v192, 0.015625
        %v194 = vadd.f32 %v193, 1e-05
        %v195 = vrsqrt.pop %v194
        %v196 = vmul.f32 %v195, %v194
        %v197 = vmul.f32 %v196, %v195
        %v198 = vmul.f32 0.5, %v197
        %v199 = vsub.f32 1.5, %v198
        %v200 = vmul.f32 %v195, %v199
        %vm201 = vweird.f32 %v194
        %vm202 = vweird.f32 %v195
        %vm203 = vmor %vm201, %vm202
        %v204 = vsel %vm203, %v195, %v200
        %v205 = vld [vmem:[%s1] sm:$0xf]
        %v206 = vmul.f32 %v205, %v204
        %v207 = vld [vmem:[%s2] sm:$0xf]
        %209 = vset.pattern.permute.xlu0 0
        %210 = vperm.xlu0 %209, %v206
        %v211 = vpop.permute.xlu0 %210
        %v213 = vmul.f32 %v180, %v211
        %215 = vset.pattern.permute.xlu0 0
        %216 = vperm.xlu0 %215, %v207
        %v217 = vpop.permute.xlu0 %216
        %v219 = vadd.f32 %v213, %v217
        %220 = vst.msk [vmem:[%s161] sm:$0xf] %vm167, %v219
        %s221 = sand.u32 %s93, 1
        %s222 = scalar_lea.sflag [#allocation3], %s221
        %s223 = sand.u32 %s93, 1
        %s224 = smul.addr %s223, 4
        %s225 = scalar_lea.vmem [#allocation2], %s224
        // Predicated region
        $region33: #{tpu_custom_call.1} parent=31 // pred_check
          %p226 = pneg %p103
        $region34: #{tpu_custom_call.1} parent=31 // pred_check_branch
          %228 = sbr.rel (%p226) target = $region36
        $region35: #{tpu_custom_call.1} parent=31 // pred_region
          %230 = vsyncadd %s222, 0
          %s231 = smul.addr %s17, 4
          %s232 = scalar_lea.hbm %s3, %s231
          %s234 = sshll.u32 %s225, 4
          %s235 = int_to_ptr.vmem [resolvable:$true] %s234
          %s236 = sshll.u32 %s232, 4
          %s237 = int_to_ptr.hbm [resolvable:$true] %s236
          %239 = dma.vmem_to_hbm [thread:$0]  %s235, 64, %s237, %s222
        $region36: #{tpu_custom_call.1} parent=31 // pred_fallthru
          _
      $region32: #{tpu_custom_call.1} parent=5 // pred_fallthru
        _
      %p240 = scmp.le.s32.totalorder 2, %s12
      // Predicated region
      $region37: #{tpu_custom_call.1} parent=5 // pred_check
        %p241 = pneg %p240
      $region38: #{tpu_custom_call.1} parent=5 // pred_check_branch
        %243 = sbr.rel (%p241) target = $region40
      $region39: #{tpu_custom_call.1} parent=5 // pred_region
        %s244 = ssub.s32 %s12, 2
        // Predicated region
        $region41: #{tpu_custom_call.1} parent=39 // pred_check
          %p245 = pneg %p109
        $region42: #{tpu_custom_call.1} parent=39 // pred_check_branch
          %247 = sbr.rel (%p245) target = $region44
        $region43: #{tpu_custom_call.1} parent=39 // pred_region
          %s248 = sand.u32 %s94, 1
          %s249 = scalar_lea.sflag [#allocation3], %s248
          %s250 = sand.u32 %s94, 1
          %s251 = smul.addr %s250, 4
          %s252 = scalar_lea.vmem [#allocation2], %s251
          %254 = dma.done %s249, 64
        $region44: #{tpu_custom_call.1} parent=39 // pred_fallthru
          _
      $region40: #{tpu_custom_call.1} parent=5 // pred_fallthru
        _
    $region6: #{tpu_custom_call.1} parent=1 // loop_footer
      %s16 = sadd.s32 1, %s12
    $region7: #{tpu_custom_call.1} parent=1 // loop_footer_branch
      %11 = sbr.rel target = $region3
    $region8: #{tpu_custom_call.1} parent=1 // loop_exit
      _
    %255 = vsyncpa [#allocation3], 1
    %s256 = scalar_lea.sflag [#allocation3], 1
    %257 = vsyncpa %s256, 1

</llo_original>
